<compile_context>
chip_gen: v7x
topology: tpu7x:2x2x1
jax: 0.10.0
libtpu: 0.0.40
codegen_flags: <defaults>
</compile_context>

<pallas_src>
import jax
import jax.numpy as jnp
from jax.experimental import pallas as pl
from jax.experimental.pallas import tpu as pltpu


def _round_up(n, m):
    return ((n + m - 1) // m) * m


def _vmem_capacity_bytes(default=64 * 2**20):
    """Physical VMEM per TensorCore (v5e/v6e: 128 MiB, v7x: 64 MiB)."""
    try:
        cap = getattr(pltpu.get_tpu_info(), "vmem_capacity_bytes", None)
        if cap:
            return int(cap)
    except Exception:
        pass
    return default


def _chain_crf_kernel(x_ref, w_ref, b_ref, mask_ref, out_ref):
    # x_ref:    [tm, D]   compute dtype (bf16 by default)
    # w_ref:    [D, tn]   folded state+transition weights (pre-transposed)
    # b_ref:    [1, tn]   folded bias (f32)
    # mask_ref: [tm, 1]   f32
    # out_ref:  [tm, tn]  f32 (flat [M, L*L]; reshaped to [B,T,L,L] outside)
    energy = jnp.dot(x_ref[...], w_ref[...], preferred_element_type=jnp.float32)
    energy = energy + b_ref[...]
    out_ref[...] = (energy * mask_ref[...]).astype(out_ref.dtype)


def chain_crf_forward(x, mask, w_state, b_state, w_trans, b_trans, *,
                      compute_dtype=jnp.bfloat16, tile_m=None, col_tile=None):
    """ChainCRF forward (bigram=True).

    x:       [B, T, D] float32
    mask:    [B, T]    float32
    w_state: [L, D]    (PyTorch Linear layout), b_state: [L]
    w_trans: [L*L, D]  (PyTorch Linear layout), b_trans: [L*L]
    returns energy [B, T, L, L] float32
    """
    B, T, D = x.shape
    L = w_state.shape[0]
    LL = L * L
    M = B * T
    isz = jnp.dtype(compute_dtype).itemsize

    # --- fold the state head into the transition head (done once, in JAX) ---
    # energy[m, i, j] = x @ (Wt.T[:, i*L+j] + Ws.T[:, j]) + bt[i*L+j] + bs[j]
    w_comb = (w_trans.T.astype(jnp.float32)
              + jnp.tile(w_state.T.astype(jnp.float32), (1, L))).astype(compute_dtype)
    b_comb = (b_trans.reshape(L, L).astype(jnp.float32)
              + b_state.astype(jnp.float32)[None, :]).reshape(1, LL).astype(jnp.float32)

    x_flat = x.reshape(M, D).astype(compute_dtype)
    mask_flat = mask.reshape(M, 1).astype(jnp.float32)

    # --- column (L*L) tiling: only needed for large label sets ---
    if col_tile is not None:
        tn = min(int(col_tile), LL)
    elif LL <= 512:
        tn = LL
    else:
        tn = 512
    if tn != LL:
        tn = min(_round_up(tn, 128), _round_up(LL, 128))
        if tn >= LL:
            tn = LL
    grid_cols = pl.cdiv(LL, tn)
    tn_pad = _round_up(tn, 128)

    # --- row tiling: biggest tile that fits the (per-generation) VMEM budget ---
    cap = _vmem_capacity_bytes()
    budget = min(40 * 2**20, (6 * cap) // 10)
    w_bytes = 2 * D * tn_pad * isz                       # conservatively double-buffered
    if tile_m is None:
        tm = 8
        for cand in (2048, 1024, 512, 256, 128, 64, 32, 16, 8):
            per_tile = (2 * cand * D * isz               # x (double-buffered)
                        + 2 * cand * tn_pad * 4          # out
                        + 2 * cand * 128 * 4)            # mask (lane-padded 1 -> 128)
            if w_bytes + per_tile <= budget:
                tm = cand
                break
    else:
        tm = _round_up(int(tile_m), 8)
    # Make sure the row grid has >= 2 steps so both v7x TensorCores get work.
    tm = max(8, min(tm, _round_up(max((M + 1) // 2, 1), 8)))
    grid_rows = pl.cdiv(M, tm)

    est = (w_bytes + 2 * tm * D * isz + 2 * tm * tn_pad * 4
           + 2 * tm * 128 * 4 + 2 * 8 * tn_pad * 4)
    vmem_limit = int(min(max(32 * 2**20, est + 8 * 2**20), (3 * cap) // 4))

    cost = pl.CostEstimate(
        flops=int(2 * M * D * LL),
        bytes_accessed=int(M * D * isz + D * LL * isz + 4 * (M * LL + M + LL)),
        transcendentals=0,
    )

    def _call(single_buffer_weights):
        w_kw = {"pipeline_mode": pl.Buffered(1)} if single_buffer_weights else {}
        in_specs = [
            pl.BlockSpec((tm, D), lambda i, j: (i, 0)),           # x rows (streamed)
            pl.BlockSpec((D, tn), lambda i, j: (0, j), **w_kw),   # W_comb
            pl.BlockSpec((1, tn), lambda i, j: (0, j), **w_kw),   # b_comb
            pl.BlockSpec((tm, 1), lambda i, j: (i, 0)),           # mask rows
        ]
        return pl.pallas_call(
            _chain_crf_kernel,
            out_shape=jax.ShapeDtypeStruct((M, LL), jnp.float32),
            grid_spec=pltpu.PrefetchScalarGridSpec(
                num_scalar_prefetch=0,
                grid=(grid_rows, grid_cols),
                in_specs=in_specs,
                out_specs=pl.BlockSpec((tm, tn), lambda i, j: (i, j)),
            ),
            compiler_params=pltpu.CompilerParams(
                dimension_semantics=("parallel", "arbitrary"),
                vmem_limit_bytes=vmem_limit,
            ),
            cost_estimate=cost,
        )(x_flat, w_comb, b_comb, mask_flat)

    if grid_cols == 1:
        # Constant W/b index maps -> single-buffer the resident weights; fall
        # back to default double-buffering if Buffered(1) is not accepted.
        try:
            out = _call(True)
            jax.block_until_ready(out)
        except Exception:
            out = _call(False)
    else:
        out = _call(False)

    return out.reshape(B, T, L, L)


def _reference_forward(x, mask, w_state, b_state, w_trans, b_trans):
    B, T, D = x.shape
    L = w_state.shape[0]
    out_s = jnp.einsum("btd,ld->btl", x, w_state) + b_state               # [B,T,L]
    out_t = (jnp.einsum("btd,kd->btk", x, w_trans) + b_trans).reshape(B, T, L, L)
    out = out_t + out_s[:, :, None, :]
    return out * mask[:, :, None, None]


def _make_inputs(key, batch, length, input_size, num_labels):
    """Deterministic small inputs (reset_parameters zeros the biases; we use
    small nonzero biases here purely to exercise the folded-bias path)."""
    L = num_labels + 1  # ChainCRF adds a pad label
    k_x, k_ws, k_wt, k_bs, k_bt = jax.random.split(key, 5)

    x = jax.random.normal(k_x, (batch, length, input_size), jnp.float32)
    valid_len = jnp.array([length, max(length - 3, 1)])[:batch]
    mask = (jnp.arange(length)[None, :] < valid_len[:, None]).astype(jnp.float32)

    bound_s = 1.0 / (input_size ** 0.5)                   # PyTorch Linear default
    w_state = jax.random.uniform(k_ws, (L, input_size), jnp.float32,
                                 minval=-bound_s, maxval=bound_s)
    gain = (6.0 / (input_size + L * L)) ** 0.5            # xavier_uniform bound
    w_trans = jax.random.uniform(k_wt, (L * L, input_size), jnp.float32,
                                 minval=-gain, maxval=gain)
    b_state = 0.1 * jax.random.normal(k_bs, (L,), jnp.float32)
    b_trans = 0.1 * jax.random.normal(k_bt, (L * L,), jnp.float32)
    return x, mask, w_state, b_state, w_trans, b_trans


if __name__ == "__main__":
    key = jax.random.PRNGKey(0)
    k1, k2 = jax.random.split(key)

    # Config 1: module-default small shapes (single column block, row grid of 2).
    batch, length, input_size, num_labels = 2, 8, 32, 4
    inputs1 = _make_inputs(k1, batch, length, input_size, num_labels)
    ref1 = _reference_forward(*inputs1)

    out_bf16 = chain_crf_forward(*inputs1)                                 # bf16 streams
    out_bf16 = jax.block_until_ready(out_bf16)
    out_f32 = chain_crf_forward(*inputs1, compute_dtype=jnp.float32)       # exact path
    out_f32 = jax.block_until_ready(out_f32)

    L1 = num_labels + 1
    assert out_bf16.shape == (batch, length, L1, L1)
    assert jnp.allclose(out_f32, ref1, atol=1e-4, rtol=1e-4), "f32 path mismatch"
    assert jnp.allclose(out_bf16, ref1, atol=5e-2, rtol=5e-2), "bf16 path mismatch"

    # Config 2: larger label set + ragged M -> exercises column tiling and the
    # partial (masked) row/column blocks, checked tightly on the f32 path.
    inputs2 = _make_inputs(k2, 2, 12, 32, 12)   # L=13, LL=169, M=24
    ref2 = _reference_forward(*inputs2)
    out2 = chain_crf_forward(*inputs2, compute_dtype=jnp.float32, col_tile=128)
    out2 = jax.block_until_ready(out2)
    assert out2.shape == (2, 12, 13, 13)
    assert jnp.allclose(out2, ref2, atol=1e-4, rtol=1e-4), "tiled path mismatch"

    # TODO(synk): ChainCRF.loss / ChainCRF.decode (sequential DP over time) are
    # separate methods, not part of forward(), and are not implemented here.
    print("KERNEL_OK")
</pallas_src>

<mosaic_0001>
module attributes {stable_mosaic.version = 11 : i64} {
  func.func @_chain_crf_kernel(%arg0: i32, %arg1: i32, %arg2: memref<8x32xbf16, #tpu.memory_space<vmem>>, %arg3: memref<32x25xbf16, #tpu.memory_space<vmem>>, %arg4: memref<1x25xf32, #tpu.memory_space<vmem>>, %arg5: memref<8x1xf32, #tpu.memory_space<vmem>>, %arg6: memref<8x25xf32, #tpu.memory_space<vmem>>) attributes {dimension_semantics = [#tpu.dimension_semantics<parallel>, #tpu.dimension_semantics<arbitrary>], iteration_bounds = array<i64: 2, 1>, scalar_prefetch = 0 : i64, scratch_operands = 0 : i64, tpu.core_type = #tpu.core_type<tc>, window_params = [{transform_indices = @transform_0, window_bounds = array<i64: 8, 32>}, {pipeline_mode = #tpu.pipeline_mode<synchronous>, transform_indices = @transform_1, window_bounds = array<i64: 32, 25>}, {pipeline_mode = #tpu.pipeline_mode<synchronous>, transform_indices = @transform_2, window_bounds = array<i64: 1, 25>}, {transform_indices = @transform_3, window_bounds = array<i64: 8, 1>}, {transform_indices = @transform_4, window_bounds = array<i64: 8, 25>}]} {
    %c0 = arith.constant 0 : index
    %c0_0 = arith.constant 0 : index
    %0 = vector.load %arg2[%c0, %c0_0] : memref<8x32xbf16, #tpu.memory_space<vmem>>, vector<8x32xbf16>
    %c0_1 = arith.constant 0 : index
    %c0_2 = arith.constant 0 : index
    %1 = vector.load %arg3[%c0_1, %c0_2] : memref<32x25xbf16, #tpu.memory_space<vmem>>, vector<32x25xbf16>
    %cst = arith.constant dense<0.000000e+00> : vector<8x25xf32>
    %2 = tpu.matmul %0, %1, %cst {dimension_numbers = #tpu.dot_dimension_numbers<[1], [0], [0], [1], [0, 0, 1, 1], [], []>} : vector<8x32xbf16>, vector<32x25xbf16>, vector<8x25xf32> -> vector<8x25xf32>
    %c0_3 = arith.constant 0 : index
    %c0_4 = arith.constant 0 : index
    %3 = vector.load %arg4[%c0_3, %c0_4] : memref<1x25xf32, #tpu.memory_space<vmem>>, vector<1x25xf32>
    %4 = vector.broadcast %3 : vector<1x25xf32> to vector<8x25xf32>
    %5 = arith.addf %2, %4 : vector<8x25xf32>
    %c0_5 = arith.constant 0 : index
    %c0_6 = arith.constant 0 : index
    %6 = vector.load %arg5[%c0_5, %c0_6] : memref<8x1xf32, #tpu.memory_space<vmem>>, vector<8x1xf32>
    %7 = vector.broadcast %6 : vector<8x1xf32> to vector<8x25xf32>
    %8 = arith.mulf %5, %7 : vector<8x25xf32>
    %c0_7 = arith.constant 0 : index
    %c0_8 = arith.constant 0 : index
    %9 = vector.load %arg6[%c0_7, %c0_8] : memref<8x25xf32, #tpu.memory_space<vmem>>, vector<8x25xf32>
    tpu.vector_store %arg6[%c0_7, %c0_8], %8 {strides = array<i32>} : memref<8x25xf32, #tpu.memory_space<vmem>>, vector<8x25xf32>,
    return
  }
  func.func @transform_0(%arg0: i32, %arg1: i32) -> (i32, i32) {
    %c0_i32 = arith.constant 0 : i32
    %c0_i32_0 = arith.constant 0 : i32
    return %arg0, %c0_i32 : i32, i32
  }
  func.func @transform_1(%arg0: i32, %arg1: i32) -> (i32, i32) {
    %c0_i32 = arith.constant 0 : i32
    %c0_i32_0 = arith.constant 0 : i32
    return %c0_i32, %arg1 : i32, i32
  }
  func.func @transform_2(%arg0: i32, %arg1: i32) -> (i32, i32) {
    %c0_i32 = arith.constant 0 : i32
    %c0_i32_0 = arith.constant 0 : i32
    return %c0_i32, %arg1 : i32, i32
  }
  func.func @transform_3(%arg0: i32, %arg1: i32) -> (i32, i32) {
    %c0_i32 = arith.constant 0 : i32
    %c0_i32_0 = arith.constant 0 : i32
    return %arg0, %c0_i32 : i32, i32
  }
  func.func @transform_4(%arg0: i32, %arg1: i32) -> (i32, i32) {
    %c0_i32 = arith.constant 0 : i32
    return %arg0, %arg1 : i32, i32
  }
}

module attributes {stable_mosaic.version = 11 : i64} {
  func.func @_chain_crf_kernel(%arg0: i32, %arg1: i32, %arg2: memref<8x32xbf16, #tpu.memory_space<vmem>>, %arg3: memref<32x25xbf16, #tpu.memory_space<vmem>>, %arg4: memref<1x25xf32, #tpu.memory_space<vmem>>, %arg5: memref<8x1xf32, #tpu.memory_space<vmem>>, %arg6: memref<8x25xf32, #tpu.memory_space<vmem>>) attributes {dimension_semantics = [#tpu.dimension_semantics<parallel>, #tpu.dimension_semantics<arbitrary>], iteration_bounds = array<i64: 2, 1>, scalar_prefetch = 0 : i64, scratch_operands = 0 : i64, tpu.core_type = #tpu.core_type<tc>, window_params = [{transform_indices = @transform_0, window_bounds = array<i64: 8, 32>}, {transform_indices = @transform_1, window_bounds = array<i64: 32, 25>}, {transform_indices = @transform_2, window_bounds = array<i64: 1, 25>}, {transform_indices = @transform_3, window_bounds = array<i64: 8, 1>}, {transform_indices = @transform_4, window_bounds = array<i64: 8, 25>}]} {
    %c0 = arith.constant 0 : index
    %c0_0 = arith.constant 0 : index
    %0 = vector.load %arg2[%c0, %c0_0] : memref<8x32xbf16, #tpu.memory_space<vmem>>, vector<8x32xbf16>
    %c0_1 = arith.constant 0 : index
    %c0_2 = arith.constant 0 : index
    %1 = vector.load %arg3[%c0_1, %c0_2] : memref<32x25xbf16, #tpu.memory_space<vmem>>, vector<32x25xbf16>
    %cst = arith.constant dense<0.000000e+00> : vector<8x25xf32>
    %2 = tpu.matmul %0, %1, %cst {dimension_numbers = #tpu.dot_dimension_numbers<[1], [0], [0], [1], [0, 0, 1, 1], [], []>} : vector<8x32xbf16>, vector<32x25xbf16>, vector<8x25xf32> -> vector<8x25xf32>
    %c0_3 = arith.constant 0 : index
    %c0_4 = arith.constant 0 : index
    %3 = vector.load %arg4[%c0_3, %c0_4] : memref<1x25xf32, #tpu.memory_space<vmem>>, vector<1x25xf32>
    %4 = vector.broadcast %3 : vector<1x25xf32> to vector<8x25xf32>
    %5 = arith.addf %2, %4 : vector<8x25xf32>
    %c0_5 = arith.constant 0 : index
    %c0_6 = arith.constant 0 : index
    %6 = vector.load %arg5[%c0_5, %c0_6] : memref<8x1xf32, #tpu.memory_space<vmem>>, vector<8x1xf32>
    %7 = vector.broadcast %6 : vector<8x1xf32> to vector<8x25xf32>
    %8 = arith.mulf %5, %7 : vector<8x25xf32>
    %c0_7 = arith.constant 0 : index
    %c0_8 = arith.constant 0 : index
    %9 = vector.load %arg6[%c0_7, %c0_8] : memref<8x25xf32, #tpu.memory_space<vmem>>, vector<8x25xf32>
    tpu.vector_store %arg6[%c0_7, %c0_8], %8 {strides = array<i32>} : memref<8x25xf32, #tpu.memory_space<vmem>>, vector<8x25xf32>,
    return
  }
  func.func @transform_0(%arg0: i32, %arg1: i32) -> (i32, i32) {
    %c0_i32 = arith.constant 0 : i32
    %c0_i32_0 = arith.constant 0 : i32
    return %arg0, %c0_i32 : i32, i32
  }
  func.func @transform_1(%arg0: i32, %arg1: i32) -> (i32, i32) {
    %c0_i32 = arith.constant 0 : i32
    %c0_i32_0 = arith.constant 0 : i32
    return %c0_i32, %arg1 : i32, i32
  }
  func.func @transform_2(%arg0: i32, %arg1: i32) -> (i32, i32) {
    %c0_i32 = arith.constant 0 : i32
    %c0_i32_0 = arith.constant 0 : i32
    return %c0_i32, %arg1 : i32, i32
  }
  func.func @transform_3(%arg0: i32, %arg1: i32) -> (i32, i32) {
    %c0_i32 = arith.constant 0 : i32
    %c0_i32_0 = arith.constant 0 : i32
    return %arg0, %c0_i32 : i32, i32
  }
  func.func @transform_4(%arg0: i32, %arg1: i32) -> (i32, i32) {
    %c0_i32 = arith.constant 0 : i32
    return %arg0, %arg1 : i32, i32
  }
}

</mosaic_0001>

<llo_original>
// kernel: tpu_custom_call.1
$region0: #{tpu_custom_call.1}
  #allocation0 [shape = 'u32[]', space=smem, size = 0x4, offset = 0x4, fixed_abs, tag = 'smem constant byte address 0x4 - core index']
  #allocation1 [shape = 'u32[144,128]{1,0:T(1,128)}', space=vmem, size = 0x12000, scoped, tag = 'internal scratch']
  %s0 = inlined_call_operand.hbm [shape: bf16[16,32], index: 0, kind: input, shape index: {}]
  %s1 = inlined_call_operand.vmem [shape: bf16[32,25], index: 1, kind: input, shape index: {}]
  %s2 = inlined_call_operand.vmem [shape: f32[1,25], index: 2, kind: input, shape index: {}]
  %s3 = inlined_call_operand.vmem [shape: f32[16,1], index: 3, kind: input, shape index: {}]
  %s4 = inlined_call_operand.hbm [shape: f32[16,25], index: 4, kind: output, shape index: {}]
  %s5 = sld [smem:[#allocation0]]
  $region53: #{tpu_custom_call.1} parent=0
    _
  %s7 = ssub.s32 1, %s5
  %s8 = scalar_select 0, %s7, %s5
  $region1: #{tpu_custom_call.1} parent=0
    #allocation2 [shape = 'u8[4096]{0}', space=vmem, size = 0x1000, scoped, tag = 'input window, operand 0']
    #allocation3 [shape = 's32[2]{0}', space=sflag, size = 0x8, scoped, tag = 'scoped memory for tpu_custom_call.1']
    #allocation4 [shape = 's32[2]{0}', space=sflag, size = 0x8, scoped, tag = 'scoped memory for tpu_custom_call.1']
    #allocation5 [shape = 'u8[8192]{0}', space=vmem, size = 0x2000, scoped, tag = 'output window, operand 0']
    %9 = vsyncpa [#allocation3], 0
    %s10 = scalar_lea.sflag [#allocation3], 1
    %11 = vsyncpa %s10, 0
    %12 = vsyncpa [#allocation4], 0
    %s13 = scalar_lea.sflag [#allocation4], 1
    %14 = vsyncpa %s13, 0
    loop: start=0, step=1, limit=4
    $region2: #{tpu_custom_call.1} parent=1 // loop_pre_header
      _
    $region3: #{tpu_custom_call.1} parent=1 // loop_header
      %s16 = sphi 0, %s20
      %p17 = scmp.ge.s32.totalorder %s16, 4
      %s23 = sphi 0, %s35
      %s24 = sphi 0, %s31
      %s25 = sphi 0, %s23
      %s26 = sphi 0, %s24
      %s27 = sphi 0, %s25
      %s28 = sphi 0, %s26
      %s38 = sphi 0, %s40
      %s41 = sphi 0, %s38
      %s42 = sphi 0, %s41
      %s58 = sphi 0, %s42
      %s64 = sphi 0, %s66
      %s67 = sphi 0, %s64
      %s68 = sphi 0, %s67
      %s84 = sphi 0, %s68
      %s90 = sphi 0, %s92
      %s93 = sphi 0, %s90
      %s94 = sphi 0, %s93
      %s110 = sphi 0, %s94
      %s116 = sphi 0, %s118
      %s119 = sphi 0, %s116
      %s120 = sphi 0, %s119
      %s136 = sphi 0, %s120
      %s144 = sphi 0, %s146
      %s147 = sphi 0, %s144
      %s148 = sphi 0, %s147
      %s164 = sphi 0, %s148
    $region4: #{tpu_custom_call.1} parent=1 // loop_header_branch
      %19 = sbr.rel (%p17) target = $region8
    $region5: #{tpu_custom_call.1} parent=1 // loop_body
      %s21 = ssub.s32 %s16, 1
      %s22 = ssub.s32 %s16, 2
      %s29 = sadd.s32 1, %s24
      %p30 = scmp.ge.s32.totalorder %s29, 1
      %s31 = scalar_select %p30, 0, %s29
      %s32 = sadd.s32 1, %s23
      %s33 = scalar_select %p30, %s32, %s23
      %p34 = scmp.ge.s32.totalorder %s33, 2
      %s35 = scalar_select %p34, 0, %s33
      %s36 = ssub.s32 %s23, %s35
      %p37 = scmp.eq.s32.totalorder %s36, 0
      %s39 = sadd.s32 %s38, 1
      %s40 = scalar_select %p37, %s38, %s39
      %p43 = pneg %p37
      %p44 = scmp.eq.s32.totalorder %s16, 1
      %p45 = por %p43, %p44
      %p46 = scmp.ne.s32.totalorder %s38, %s41
      %p47 = scmp.eq.s32.totalorder %s16, 0
      %p48 = por %p46, %p47
      %p49 = scmp.ne.s32.totalorder %s38, %s41
      %p50 = scmp.eq.s32.totalorder %s21, 1
      %p51 = por %p49, %p50
      %p52 = scmp.ne.s32.totalorder %s41, %s42
      %p53 = scmp.eq.s32.totalorder %s21, 0
      %p54 = por %p52, %p53
      %p55 = scmp.ne.s32.totalorder %s41, %s42
      %p56 = scmp.eq.s32.totalorder %s22, 1
      %p57 = por %p55, %p56
      %p59 = scmp.ne.s32.totalorder %s42, %s58
      %p60 = scmp.eq.s32.totalorder %s22, 0
      %p61 = por %p59, %p60
      %s62 = ssub.s32 %s24, %s31
      %p63 = scmp.eq.s32.totalorder %s62, 0
      %s65 = sadd.s32 %s64, 1
      %s66 = scalar_select %p63, %s64, %s65
      %p69 = pneg %p63
      %p70 = scmp.eq.s32.totalorder %s16, 1
      %p71 = por %p69, %p70
      %p72 = scmp.ne.s32.totalorder %s64, %s67
      %p73 = scmp.eq.s32.totalorder %s16, 0
      %p74 = por %p72, %p73
      %p75 = scmp.ne.s32.totalorder %s64, %s67
      %p76 = scmp.eq.s32.totalorder %s21, 1
      %p77 = por %p75, %p76
      %p78 = scmp.ne.s32.totalorder %s67, %s68
      %p79 = scmp.eq.s32.totalorder %s21, 0
      %p80 = por %p78, %p79
      %p81 = scmp.ne.s32.totalorder %s67, %s68
      %p82 = scmp.eq.s32.totalorder %s22, 1
      %p83 = por %p81, %p82
      %p85 = scmp.ne.s32.totalorder %s68, %s84
      %p86 = scmp.eq.s32.totalorder %s22, 0
      %p87 = por %p85, %p86
      %s88 = ssub.s32 %s24, %s31
      %p89 = scmp.eq.s32.totalorder %s88, 0
      %s91 = sadd.s32 %s90, 1
      %s92 = scalar_select %p89, %s90, %s91
      %p95 = pneg %p89
      %p96 = scmp.eq.s32.totalorder %s16, 1
      %p97 = por %p95, %p96
      %p98 = scmp.ne.s32.totalorder %s90, %s93
      %p99 = scmp.eq.s32.totalorder %s16, 0
      %p100 = por %p98, %p99
      %p101 = scmp.ne.s32.totalorder %s90, %s93
      %p102 = scmp.eq.s32.totalorder %s21, 1
      %p103 = por %p101, %p102
      %p104 = scmp.ne.s32.totalorder %s93, %s94
      %p105 = scmp.eq.s32.totalorder %s21, 0
      %p106 = por %p104, %p105
      %p107 = scmp.ne.s32.totalorder %s93, %s94
      %p108 = scmp.eq.s32.totalorder %s22, 1
      %p109 = por %p107, %p108
      %p111 = scmp.ne.s32.totalorder %s94, %s110
      %p112 = scmp.eq.s32.totalorder %s22, 0
      %p113 = por %p111, %p112
      %s114 = ssub.s32 %s23, %s35
      %p115 = scmp.eq.s32.totalorder %s114, 0
      %s117 = sadd.s32 %s116, 1
      %s118 = scalar_select %p115, %s116, %s117
      %p121 = pneg %p115
      %p122 = scmp.eq.s32.totalorder %s16, 1
      %p123 = por %p121, %p122
      %p124 = scmp.ne.s32.totalorder %s116, %s119
      %p125 = scmp.eq.s32.totalorder %s16, 0
      %p126 = por %p124, %p125
      %p127 = scmp.ne.s32.totalorder %s116, %s119
      %p128 = scmp.eq.s32.totalorder %s21, 1
      %p129 = por %p127, %p128
      %p130 = scmp.ne.s32.totalorder %s119, %s120
      %p131 = scmp.eq.s32.totalorder %s21, 0
      %p132 = por %p130, %p131
      %p133 = scmp.ne.s32.totalorder %s119, %s120
      %p134 = scmp.eq.s32.totalorder %s22, 1
      %p135 = por %p133, %p134
      %p137 = scmp.ne.s32.totalorder %s120, %s136
      %p138 = scmp.eq.s32.totalorder %s22, 0
      %p139 = por %p137, %p138
      %s140 = ssub.s32 %s23, %s35
      %s141 = ssub.s32 %s24, %s31
      %s142 = sor.u32 %s140, %s141
      %p143 = scmp.eq.s32.totalorder %s142, 0
      %s145 = sadd.s32 %s144, 1
      %s146 = scalar_select %p143, %s144, %s145
      %p149 = pneg %p143
      %p150 = scmp.eq.s32.totalorder %s16, 1
      %p151 = por %p149, %p150
      %p152 = scmp.ne.s32.totalorder %s144, %s147
      %p153 = scmp.eq.s32.totalorder %s16, 0
      %p154 = por %p152, %p153
      %p155 = scmp.ne.s32.totalorder %s144, %s147
      %p156 = scmp.eq.s32.totalorder %s21, 1
      %p157 = por %p155, %p156
      %p158 = scmp.ne.s32.totalorder %s147, %s148
      %p159 = scmp.eq.s32.totalorder %s21, 0
      %p160 = por %p158, %p159
      %p161 = scmp.ne.s32.totalorder %s147, %s148
      %p162 = scmp.eq.s32.totalorder %s22, 1
      %p163 = por %p161, %p162
      %p165 = scmp.ne.s32.totalorder %s148, %s164
      %p166 = scmp.eq.s32.totalorder %s22, 0
      %p167 = por %p165, %p166
      %p168 = scmp.le.s32.totalorder 1, %s16
      %p169 = scmp.lt.s32.totalorder %s16, 3
      %p170 = pnand %p168, %p169
      %p171 = pneg %p170
      // Predicated region
      $region9: #{tpu_custom_call.1} parent=5 // pred_check
        _
      $region10: #{tpu_custom_call.1} parent=5 // pred_check_branch
        %173 = sbr.rel (%p170) target = $region12
      $region11: #{tpu_custom_call.1} parent=5 // pred_region
        %s174 = ssub.s32 %s16, 1
        // Predicated region
        $region13: #{tpu_custom_call.1} parent=11 // pred_check
          %p175 = pneg %p80
        $region14: #{tpu_custom_call.1} parent=11 // pred_check_branch
          %177 = sbr.rel (%p175) target = $region16
        $region15: #{tpu_custom_call.1} parent=11 // pred_region
          %p178 = scmp.lt.s32.totalorder %s26, 0
          %s179 = scalar_select %p178, %s26, 0
          %s180 = smul.addr %s179, 4
          %s181 = scalar_lea.vmem %s1, %s180
        $region16: #{tpu_custom_call.1} parent=11 // pred_fallthru
          _
        // Predicated region
        $region17: #{tpu_custom_call.1} parent=11 // pred_check
          %p182 = pneg %p106
        $region18: #{tpu_custom_call.1} parent=11 // pred_check_branch
          %184 = sbr.rel (%p182) target = $region20
        $region19: #{tpu_custom_call.1} parent=11 // pred_region
          %p185 = scmp.lt.s32.totalorder %s26, 0
          %s186 = scalar_select %p185, %s26, 0
          %s187 = scalar_lea.vmem %s2, %s186
        $region20: #{tpu_custom_call.1} parent=11 // pred_fallthru
          _
      $region12: #{tpu_custom_call.1} parent=5 // pred_fallthru
        _
      %p188 = scmp.lt.s32.totalorder %s16, 2
      // Predicated region
      $region21: #{tpu_custom_call.1} parent=5 // pred_check
        %p189 = pneg %p188
      $region22: #{tpu_custom_call.1} parent=5 // pred_check_branch
        %191 = sbr.rel (%p189) target = $region24
      $region23: #{tpu_custom_call.1} parent=5 // pred_region
        // Predicated region
        $region25: #{tpu_custom_call.1} parent=23 // pred_check
          %p192 = pneg %p48
        $region26: #{tpu_custom_call.1} parent=23 // pred_check_branch
          %194 = sbr.rel (%p192) target = $region28
        $region27: #{tpu_custom_call.1} parent=23 // pred_region
          %s195 = sand.u32 %s38, 1
          %s196 = scalar_lea.sflag [#allocation3], %s195
          %s197 = sand.u32 %s38, 1
          %s198 = smul.addr %s197, 4
          %s199 = scalar_lea.vmem [#allocation2], %s198
          %s201 = ssub.s32 64, 64
          %202 = vsyncadd %s196, %s201
          %s203 = smul.addr %s23, 64
          %s204 = scalar_lea.hbm %s0, %s203
          %s206 = sshll.u32 %s199, 4
          %s207 = int_to_ptr.vmem [resolvable:$true] %s206
          %209 = dma.hbm_to_vmem [thread:$0]  %s204, 64, %s207, %s196
        $region28: #{tpu_custom_call.1} parent=23 // pred_fallthru
          _
        // Predicated region
        $region29: #{tpu_custom_call.1} parent=23 // pred_check
          %p210 = pneg %p126
        $region30: #{tpu_custom_call.1} parent=23 // pred_check_branch
          %212 = sbr.rel (%p210) target = $region32
        $region31: #{tpu_custom_call.1} parent=23 // pred_region
          %p213 = scmp.lt.s32.totalorder %s23, 1
          %s214 = scalar_select %p213, %s23, 1
          %s215 = smul.addr %s214, 8
          %s216 = scalar_lea.vmem %s3, %s215
        $region32: #{tpu_custom_call.1} parent=23 // pred_fallthru
          _
      $region24: #{tpu_custom_call.1} parent=5 // pred_fallthru
        _
      %p217 = scmp.le.s32.totalorder 1, %s16
      %p218 = scmp.lt.s32.totalorder %s16, 3
      %p219 = pnand %p217, %p218
      %p220 = pneg %p219
      // Predicated region
      $region33: #{tpu_custom_call.1} parent=5 // pred_check
        _
      $region34: #{tpu_custom_call.1} parent=5 // pred_check_branch
        %222 = sbr.rel (%p219) target = $region36
      $region35: #{tpu_custom_call.1} parent=5 // pred_region
        %s223 = ssub.s32 %s16, 1
        %s224 = sand.u32 %s41, 1
        %s225 = scalar_lea.sflag [#allocation3], %s224
        %s226 = sand.u32 %s41, 1
        %s227 = smul.addr %s226, 4
        %s228 = scalar_lea.vmem [#allocation2], %s227
        // Predicated region
        $region37: #{tpu_custom_call.1} parent=35 // pred_check
          %p229 = pneg %p54
        $region38: #{tpu_custom_call.1} parent=35 // pred_check_branch
          %231 = sbr.rel (%p229) target = $region40
        $region39: #{tpu_custom_call.1} parent=35 // pred_region
          %232 = dma.done %s225, 64
        $region40: #{tpu_custom_call.1} parent=35 // pred_fallthru
          _
        %s233 = sand.u32 %s41, 1
        %s234 = scalar_lea.sflag [#allocation3], %s233
        %s235 = sand.u32 %s41, 1
        %s236 = smul.addr %s235, 4
        %s237 = scalar_lea.vmem [#allocation2], %s236
        %p238 = pneg %p54
        %p239 = pneg %p51
        %p240 = scmp.lt.s32.totalorder %s26, 0
        %s241 = scalar_select %p240, %s26, 0
        %s242 = smul.addr %s241, 4
        %s243 = scalar_lea.vmem %s1, %s242
        %p244 = pneg %p80
        %p245 = pneg %p77
        %p246 = scmp.lt.s32.totalorder %s26, 0
        %s247 = scalar_select %p246, %s26, 0
        %s248 = scalar_lea.vmem %s2, %s247
        %p249 = pneg %p106
        %p250 = pneg %p103
        %p251 = scmp.lt.s32.totalorder %s25, 1
        %s252 = scalar_select %p251, %s25, 1
        %s253 = smul.addr %s252, 8
        %s254 = scalar_lea.vmem %s3, %s253
        %p255 = pneg %p132
        %p256 = pneg %p129
        %p257 = pneg %p160
        %p258 = pneg %p157
        %s259 = sand.u32 %s147, 1
        %s260 = scalar_lea.sflag [#allocation4], %s259
        %s261 = sand.u32 %s147, 1
        %s262 = smul.addr %s261, 8
        %s263 = scalar_lea.vmem [#allocation5], %s262
        %p264 = scmp.lt.s32.totalorder %s26, 0
        %s265 = scalar_select %p264, %s26, 0
        %s266 = smul.addr %s265, 4
        %s267 = scalar_lea.vmem %s1, %s266
        %p268 = scmp.lt.s32.totalorder %s26, 0
        %s269 = scalar_select %p268, %s26, 0
        %s270 = scalar_lea.vmem %s2, %s269
        %p271 = scmp.lt.s32.totalorder %s25, 1
        %s272 = scalar_select %p271, %s25, 1
        %s273 = smul.addr %s272, 8
        %s274 = scalar_lea.vmem %s3, %s273
        %v276 = vld [vmem:[%s228] sm:$0xf]
        %v277 = vld [vmem:[%s267] sm:$0xf]
        %v278 = vld [vmem:[%s267 + $0x4] sm:$0xf]
        %v279 = vld [vmem:[%s267 + $0x8] sm:$0xf]
        %v280 = vld [vmem:[%s267 + $0xc] sm:$0xf]
        %v281 = vld [vmem:[%s270] sm:$0x1]
        %v283 = vlaneseq
        %v284 = vshrl.u32 %v283, 7
        %v285 = vsub.s32 0, %v284
        %v286 = vrot.slane %v281, %v285
        %v292 = vunpack.c.l.b16 %v277
        %v293 = vunpack.c.l.b16 %v278
        %v294 = vunpack.c.l.b16 %v279
        %v295 = vunpack.c.l.b16 %v280
        %v296 = vpack.c.b16 %v293, %v292
        %v297 = vpack.c.b16 %v295, %v294
        %vm300 = vcmask 261120
        %v302 = vsel %vm300, %v276, 0
        %304 = vmatprep.subr.bf16.mxu0 0
        %305 = vmatpush1.bf16.msra.mxu0 %v296
        %306 = vmatprep.subr.bf16.mxu0 0
        %307 = vmatpush1.bf16.msra.mxu0 %v297
        %308 = vmatprep.subr.bf16.mxu0 0
        %309 = vmatpush1.bf16.msra.mxu0 0
        %310 = vmatprep.subr.bf16.mxu0 0
        %311 = vmatpush1.bf16.msra.mxu0 0
        %312 = vmatprep.subr.bf16.mxu0 0
        %313 = vmatpush1.bf16.msra.mxu0 0
        %314 = vmatprep.subr.bf16.mxu0 0
        %315 = vmatpush1.bf16.msra.mxu0 0
        %316 = vmatprep.subr.bf16.mxu0 0
        %317 = vmatpush1.bf16.msra.mxu0 0
        %318 = vmatprep.subr.bf16.mxu0 0
        %319 = vmatpush1.bf16.msra.mxu0 0
        %320 = vmatprep.subr.bf16.mxu0 0
        %321 = vmatpush1.bf16.msra.mxu0 0
        %322 = vmatprep.subr.bf16.mxu0 0
        %323 = vmatpush1.bf16.msra.mxu0 0
        %324 = vmatprep.subr.bf16.mxu0 0
        %325 = vmatpush1.bf16.msra.mxu0 0
        %326 = vmatprep.subr.bf16.mxu0 0
        %327 = vmatpush1.bf16.msra.mxu0 0
        %328 = vmatprep.subr.bf16.mxu0 0
        %329 = vmatpush1.bf16.msra.mxu0 0
        %330 = vmatprep.subr.bf16.mxu0 0
        %331 = vmatpush1.bf16.msra.mxu0 0
        %332 = vmatprep.subr.bf16.mxu0 0
        %333 = vmatpush1.bf16.msra.mxu0 0
        %334 = vmatprep.subr.bf16.mxu0 0
        %335 = vmatpush1.bf16.msra.mxu0 0
        %336 = vmatprep.mubr.bf16.mxu0 0
        %337 = vmatmul.mubr.bf16.gmra.mrb[0].mxu0 %v302
        %v338 = vpop.f32.mrb[0].mxu0
        %v339 = vadd.f32 %v286, %v338
        %v340 = vpop.f32.mrb[0].mxu0
        %v341 = vpop.f32.mrb[0].mxu0
        %v342 = vpop.f32.mrb[0].mxu0
        %343 = vdwg.mxu0
        %v344 = vld [vmem:[%s274] sm:$0xff]
        %346 = vset.pattern.permute.xlu0 0
        %347 = vperm.xlu0 %346, %v344
        %v348 = vpop.permute.xlu0 %347
        %v350 = vmul.f32 %v339, %v348
        %vm351 = vcmask 203776
        %352 = vst.msk [vmem:[%s263] sm:$0xff] %vm351, %v350
        %s353 = sand.u32 %s147, 1
        %s354 = scalar_lea.sflag [#allocation4], %s353
        %s355 = sand.u32 %s147, 1
        %s356 = smul.addr %s355, 8
        %s357 = scalar_lea.vmem [#allocation5], %s356
        // Predicated region
        $region41: #{tpu_custom_call.1} parent=35 // pred_check
          %p358 = pneg %p157
        $region42: #{tpu_custom_call.1} parent=35 // pred_check_branch
          %360 = sbr.rel (%p358) target = $region44
        $region43: #{tpu_custom_call.1} parent=35 // pred_region
          %s362 = ssub.s32 128, 128
          %363 = vsyncadd %s354, %s362
          %s364 = sadd.s32 %s26, %s25
          %s365 = smul.addr %s364, 128
          %s366 = scalar_lea.hbm %s4, %s365
          %s368 = sshll.u32 %s357, 4
          %s369 = int_to_ptr.vmem [resolvable:$true] %s368
          %371 = dma.vmem_to_hbm [thread:$0]  %s369, 128, %s366, %s354
        $region44: #{tpu_custom_call.1} parent=35 // pred_fallthru
          _
      $region36: #{tpu_custom_call.1} parent=5 // pred_fallthru
        _
      %p372 = scmp.le.s32.totalorder 2, %s16
      // Predicated region
      $region45: #{tpu_custom_call.1} parent=5 // pred_check
        %p373 = pneg %p372
      $region46: #{tpu_custom_call.1} parent=5 // pred_check_branch
        %375 = sbr.rel (%p373) target = $region48
      $region47: #{tpu_custom_call.1} parent=5 // pred_region
        %s376 = ssub.s32 %s16, 2
        // Predicated region
        $region49: #{tpu_custom_call.1} parent=47 // pred_check
          %p377 = pneg %p163
        $region50: #{tpu_custom_call.1} parent=47 // pred_check_branch
          %379 = sbr.rel (%p377) target = $region52
        $region51: #{tpu_custom_call.1} parent=47 // pred_region
          %s380 = sand.u32 %s148, 1
          %s381 = scalar_lea.sflag [#allocation4], %s380
          %s382 = sand.u32 %s148, 1
          %s383 = smul.addr %s382, 8
          %s384 = scalar_lea.vmem [#allocation5], %s383
          %385 = dma.done %s381, 128
        $region52: #{tpu_custom_call.1} parent=47 // pred_fallthru
          _
      $region48: #{tpu_custom_call.1} parent=5 // pred_fallthru
        _
    $region6: #{tpu_custom_call.1} parent=1 // loop_footer
      %s20 = sadd.s32 1, %s16
    $region7: #{tpu_custom_call.1} parent=1 // loop_footer_branch
      %15 = sbr.rel target = $region3
    $region8: #{tpu_custom_call.1} parent=1 // loop_exit
      _
    %386 = vsyncpa [#allocation3], 1
    %s387 = scalar_lea.sflag [#allocation3], 1
    %388 = vsyncpa %s387, 1
    %389 = vsyncpa [#allocation4], 1
    %s390 = scalar_lea.sflag [#allocation4], 1
    %391 = vsyncpa %s390, 1

// kernel: tpu_custom_call.1
$region0: #{tpu_custom_call.1}
  #allocation0 [shape = 'u32[]', space=smem, size = 0x4, offset = 0x4, fixed_abs, tag = 'smem constant byte address 0x4 - core index']
  #allocation1 [shape = 'u32[144,128]{1,0:T(1,128)}', space=vmem, size = 0x12000, scoped, tag = 'internal scratch']
  %s0 = inlined_call_operand.hbm [shape: bf16[16,32], index: 0, kind: input, shape index: {}]
  %s1 = inlined_call_operand.vmem [shape: bf16[32,25], index: 1, kind: input, shape index: {}]
  %s2 = inlined_call_operand.vmem [shape: f32[1,25], index: 2, kind: input, shape index: {}]
  %s3 = inlined_call_operand.vmem [shape: f32[16,1], index: 3, kind: input, shape index: {}]
  %s4 = inlined_call_operand.hbm [shape: f32[16,25], index: 4, kind: output, shape index: {}]
  %s5 = sld [smem:[#allocation0]]
  $region53: #{tpu_custom_call.1} parent=0
    _
  %s7 = ssub.s32 1, %s5
  %s8 = scalar_select 0, %s7, %s5
  $region1: #{tpu_custom_call.1} parent=0
    #allocation2 [shape = 'u8[4096]{0}', space=vmem, size = 0x1000, scoped, tag = 'input window, operand 0']
    #allocation3 [shape = 's32[2]{0}', space=sflag, size = 0x8, scoped, tag = 'scoped memory for tpu_custom_call.1']
    #allocation4 [shape = 's32[2]{0}', space=sflag, size = 0x8, scoped, tag = 'scoped memory for tpu_custom_call.1']
    #allocation5 [shape = 'u8[8192]{0}', space=vmem, size = 0x2000, scoped, tag = 'output window, operand 0']
    %9 = vsyncpa [#allocation3], 0
    %s10 = scalar_lea.sflag [#allocation3], 1
    %11 = vsyncpa %s10, 0
    %12 = vsyncpa [#allocation4], 0
    %s13 = scalar_lea.sflag [#allocation4], 1
    %14 = vsyncpa %s13, 0
    loop: start=0, step=1, limit=4
    $region2: #{tpu_custom_call.1} parent=1 // loop_pre_header
      _
    $region3: #{tpu_custom_call.1} parent=1 // loop_header
      %s16 = sphi 0, %s20
      %p17 = scmp.ge.s32.totalorder %s16, 4
      %s23 = sphi 0, %s35
      %s24 = sphi 0, %s31
      %s25 = sphi 0, %s23
      %s26 = sphi 0, %s24
      %s27 = sphi 0, %s25
      %s28 = sphi 0, %s26
      %s38 = sphi 0, %s40
      %s41 = sphi 0, %s38
      %s42 = sphi 0, %s41
      %s58 = sphi 0, %s42
      %s64 = sphi 0, %s66
      %s67 = sphi 0, %s64
      %s68 = sphi 0, %s67
      %s84 = sphi 0, %s68
      %s90 = sphi 0, %s92
      %s93 = sphi 0, %s90
      %s94 = sphi 0, %s93
      %s110 = sphi 0, %s94
      %s116 = sphi 0, %s118
      %s119 = sphi 0, %s116
      %s120 = sphi 0, %s119
      %s136 = sphi 0, %s120
      %s144 = sphi 0, %s146
      %s147 = sphi 0, %s144
      %s148 = sphi 0, %s147
      %s164 = sphi 0, %s148
    $region4: #{tpu_custom_call.1} parent=1 // loop_header_branch
      %19 = sbr.rel (%p17) target = $region8
    $region5: #{tpu_custom_call.1} parent=1 // loop_body
      %s21 = ssub.s32 %s16, 1
      %s22 = ssub.s32 %s16, 2
      %s29 = sadd.s32 1, %s24
      %p30 = scmp.ge.s32.totalorder %s29, 1
      %s31 = scalar_select %p30, 0, %s29
      %s32 = sadd.s32 1, %s23
      %s33 = scalar_select %p30, %s32, %s23
      %p34 = scmp.ge.s32.totalorder %s33, 2
      %s35 = scalar_select %p34, 0, %s33
      %s36 = ssub.s32 %s23, %s35
      %p37 = scmp.eq.s32.totalorder %s36, 0
      %s39 = sadd.s32 %s38, 1
      %s40 = scalar_select %p37, %s38, %s39
      %p43 = pneg %p37
      %p44 = scmp.eq.s32.totalorder %s16, 1
      %p45 = por %p43, %p44
      %p46 = scmp.ne.s32.totalorder %s38, %s41
      %p47 = scmp.eq.s32.totalorder %s16, 0
      %p48 = por %p46, %p47
      %p49 = scmp.ne.s32.totalorder %s38, %s41
      %p50 = scmp.eq.s32.totalorder %s21, 1
      %p51 = por %p49, %p50
      %p52 = scmp.ne.s32.totalorder %s41, %s42
      %p53 = scmp.eq.s32.totalorder %s21, 0
      %p54 = por %p52, %p53
      %p55 = scmp.ne.s32.totalorder %s41, %s42
      %p56 = scmp.eq.s32.totalorder %s22, 1
      %p57 = por %p55, %p56
      %p59 = scmp.ne.s32.totalorder %s42, %s58
      %p60 = scmp.eq.s32.totalorder %s22, 0
      %p61 = por %p59, %p60
      %s62 = ssub.s32 %s24, %s31
      %p63 = scmp.eq.s32.totalorder %s62, 0
      %s65 = sadd.s32 %s64, 1
      %s66 = scalar_select %p63, %s64, %s65
      %p69 = pneg %p63
      %p70 = scmp.eq.s32.totalorder %s16, 1
      %p71 = por %p69, %p70
      %p72 = scmp.ne.s32.totalorder %s64, %s67
      %p73 = scmp.eq.s32.totalorder %s16, 0
      %p74 = por %p72, %p73
      %p75 = scmp.ne.s32.totalorder %s64, %s67
      %p76 = scmp.eq.s32.totalorder %s21, 1
      %p77 = por %p75, %p76
      %p78 = scmp.ne.s32.totalorder %s67, %s68
      %p79 = scmp.eq.s32.totalorder %s21, 0
      %p80 = por %p78, %p79
      %p81 = scmp.ne.s32.totalorder %s67, %s68
      %p82 = scmp.eq.s32.totalorder %s22, 1
      %p83 = por %p81, %p82
      %p85 = scmp.ne.s32.totalorder %s68, %s84
      %p86 = scmp.eq.s32.totalorder %s22, 0
      %p87 = por %p85, %p86
      %s88 = ssub.s32 %s24, %s31
      %p89 = scmp.eq.s32.totalorder %s88, 0
      %s91 = sadd.s32 %s90, 1
      %s92 = scalar_select %p89, %s90, %s91
      %p95 = pneg %p89
      %p96 = scmp.eq.s32.totalorder %s16, 1
      %p97 = por %p95, %p96
      %p98 = scmp.ne.s32.totalorder %s90, %s93
      %p99 = scmp.eq.s32.totalorder %s16, 0
      %p100 = por %p98, %p99
      %p101 = scmp.ne.s32.totalorder %s90, %s93
      %p102 = scmp.eq.s32.totalorder %s21, 1
      %p103 = por %p101, %p102
      %p104 = scmp.ne.s32.totalorder %s93, %s94
      %p105 = scmp.eq.s32.totalorder %s21, 0
      %p106 = por %p104, %p105
      %p107 = scmp.ne.s32.totalorder %s93, %s94
      %p108 = scmp.eq.s32.totalorder %s22, 1
      %p109 = por %p107, %p108
      %p111 = scmp.ne.s32.totalorder %s94, %s110
      %p112 = scmp.eq.s32.totalorder %s22, 0
      %p113 = por %p111, %p112
      %s114 = ssub.s32 %s23, %s35
      %p115 = scmp.eq.s32.totalorder %s114, 0
      %s117 = sadd.s32 %s116, 1
      %s118 = scalar_select %p115, %s116, %s117
      %p121 = pneg %p115
      %p122 = scmp.eq.s32.totalorder %s16, 1
      %p123 = por %p121, %p122
      %p124 = scmp.ne.s32.totalorder %s116, %s119
      %p125 = scmp.eq.s32.totalorder %s16, 0
      %p126 = por %p124, %p125
      %p127 = scmp.ne.s32.totalorder %s116, %s119
      %p128 = scmp.eq.s32.totalorder %s21, 1
      %p129 = por %p127, %p128
      %p130 = scmp.ne.s32.totalorder %s119, %s120
      %p131 = scmp.eq.s32.totalorder %s21, 0
      %p132 = por %p130, %p131
      %p133 = scmp.ne.s32.totalorder %s119, %s120
      %p134 = scmp.eq.s32.totalorder %s22, 1
      %p135 = por %p133, %p134
      %p137 = scmp.ne.s32.totalorder %s120, %s136
      %p138 = scmp.eq.s32.totalorder %s22, 0
      %p139 = por %p137, %p138
      %s140 = ssub.s32 %s23, %s35
      %s141 = ssub.s32 %s24, %s31
      %s142 = sor.u32 %s140, %s141
      %p143 = scmp.eq.s32.totalorder %s142, 0
      %s145 = sadd.s32 %s144, 1
      %s146 = scalar_select %p143, %s144, %s145
      %p149 = pneg %p143
      %p150 = scmp.eq.s32.totalorder %s16, 1
      %p151 = por %p149, %p150
      %p152 = scmp.ne.s32.totalorder %s144, %s147
      %p153 = scmp.eq.s32.totalorder %s16, 0
      %p154 = por %p152, %p153
      %p155 = scmp.ne.s32.totalorder %s144, %s147
      %p156 = scmp.eq.s32.totalorder %s21, 1
      %p157 = por %p155, %p156
      %p158 = scmp.ne.s32.totalorder %s147, %s148
      %p159 = scmp.eq.s32.totalorder %s21, 0
      %p160 = por %p158, %p159
      %p161 = scmp.ne.s32.totalorder %s147, %s148
      %p162 = scmp.eq.s32.totalorder %s22, 1
      %p163 = por %p161, %p162
      %p165 = scmp.ne.s32.totalorder %s148, %s164
      %p166 = scmp.eq.s32.totalorder %s22, 0
      %p167 = por %p165, %p166
      %p168 = scmp.le.s32.totalorder 1, %s16
      %p169 = scmp.lt.s32.totalorder %s16, 3
      %p170 = pnand %p168, %p169
      %p171 = pneg %p170
      // Predicated region
      $region9: #{tpu_custom_call.1} parent=5 // pred_check
        _
      $region10: #{tpu_custom_call.1} parent=5 // pred_check_branch
        %173 = sbr.rel (%p170) target = $region12
      $region11: #{tpu_custom_call.1} parent=5 // pred_region
        %s174 = ssub.s32 %s16, 1
        // Predicated region
        $region13: #{tpu_custom_call.1} parent=11 // pred_check
          %p175 = pneg %p80
        $region14: #{tpu_custom_call.1} parent=11 // pred_check_branch
          %177 = sbr.rel (%p175) target = $region16
        $region15: #{tpu_custom_call.1} parent=11 // pred_region
          %p178 = scmp.lt.s32.totalorder %s26, 0
          %s179 = scalar_select %p178, %s26, 0
          %s180 = smul.addr %s179, 4
          %s181 = scalar_lea.vmem %s1, %s180
        $region16: #{tpu_custom_call.1} parent=11 // pred_fallthru
          _
        // Predicated region
        $region17: #{tpu_custom_call.1} parent=11 // pred_check
          %p182 = pneg %p106
        $region18: #{tpu_custom_call.1} parent=11 // pred_check_branch
          %184 = sbr.rel (%p182) target = $region20
        $region19: #{tpu_custom_call.1} parent=11 // pred_region
          %p185 = scmp.lt.s32.totalorder %s26, 0
          %s186 = scalar_select %p185, %s26, 0
          %s187 = scalar_lea.vmem %s2, %s186
        $region20: #{tpu_custom_call.1} parent=11 // pred_fallthru
          _
      $region12: #{tpu_custom_call.1} parent=5 // pred_fallthru
        _
      %p188 = scmp.lt.s32.totalorder %s16, 2
      // Predicated region
      $region21: #{tpu_custom_call.1} parent=5 // pred_check
        %p189 = pneg %p188
      $region22: #{tpu_custom_call.1} parent=5 // pred_check_branch
        %191 = sbr.rel (%p189) target = $region24
      $region23: #{tpu_custom_call.1} parent=5 // pred_region
        // Predicated region
        $region25: #{tpu_custom_call.1} parent=23 // pred_check
          %p192 = pneg %p48
        $region26: #{tpu_custom_call.1} parent=23 // pred_check_branch
          %194 = sbr.rel (%p192) target = $region28
        $region27: #{tpu_custom_call.1} parent=23 // pred_region
          %s195 = sand.u32 %s38, 1
          %s196 = scalar_lea.sflag [#allocation3], %s195
          %s197 = sand.u32 %s38, 1
          %s198 = smul.addr %s197, 4
          %s199 = scalar_lea.vmem [#allocation2], %s198
          %s201 = ssub.s32 64, 64
          %202 = vsyncadd %s196, %s201
          %s203 = smul.addr %s23, 64
          %s204 = scalar_lea.hbm %s0, %s203
          %s206 = sshll.u32 %s199, 4
          %s207 = int_to_ptr.vmem [resolvable:$true] %s206
          %209 = dma.hbm_to_vmem [thread:$0]  %s204, 64, %s207, %s196
        $region28: #{tpu_custom_call.1} parent=23 // pred_fallthru
          _
        // Predicated region
        $region29: #{tpu_custom_call.1} parent=23 // pred_check
          %p210 = pneg %p126
        $region30: #{tpu_custom_call.1} parent=23 // pred_check_branch
          %212 = sbr.rel (%p210) target = $region32
        $region31: #{tpu_custom_call.1} parent=23 // pred_region
          %p213 = scmp.lt.s32.totalorder %s23, 1
          %s214 = scalar_select %p213, %s23, 1
          %s215 = smul.addr %s214, 8
          %s216 = scalar_lea.vmem %s3, %s215
        $region32: #{tpu_custom_call.1} parent=23 // pred_fallthru
          _
      $region24: #{tpu_custom_call.1} parent=5 // pred_fallthru
        _
      %p217 = scmp.le.s32.totalorder 1, %s16
      %p218 = scmp.lt.s32.totalorder %s16, 3
      %p219 = pnand %p217, %p218
      %p220 = pneg %p219
      // Predicated region
      $region33: #{tpu_custom_call.1} parent=5 // pred_check
        _
      $region34: #{tpu_custom_call.1} parent=5 // pred_check_branch
        %222 = sbr.rel (%p219) target = $region36
      $region35: #{tpu_custom_call.1} parent=5 // pred_region
        %s223 = ssub.s32 %s16, 1
        %s224 = sand.u32 %s41, 1
        %s225 = scalar_lea.sflag [#allocation3], %s224
        %s226 = sand.u32 %s41, 1
        %s227 = smul.addr %s226, 4
        %s228 = scalar_lea.vmem [#allocation2], %s227
        // Predicated region
        $region37: #{tpu_custom_call.1} parent=35 // pred_check
          %p229 = pneg %p54
        $region38: #{tpu_custom_call.1} parent=35 // pred_check_branch
          %231 = sbr.rel (%p229) target = $region40
        $region39: #{tpu_custom_call.1} parent=35 // pred_region
          %232 = dma.done %s225, 64
        $region40: #{tpu_custom_call.1} parent=35 // pred_fallthru
          _
        %s233 = sand.u32 %s41, 1
        %s234 = scalar_lea.sflag [#allocation3], %s233
        %s235 = sand.u32 %s41, 1
        %s236 = smul.addr %s235, 4
        %s237 = scalar_lea.vmem [#allocation2], %s236
        %p238 = pneg %p54
        %p239 = pneg %p51
        %p240 = scmp.lt.s32.totalorder %s26, 0
        %s241 = scalar_select %p240, %s26, 0
        %s242 = smul.addr %s241, 4
        %s243 = scalar_lea.vmem %s1, %s242
        %p244 = pneg %p80
        %p245 = pneg %p77
        %p246 = scmp.lt.s32.totalorder %s26, 0
        %s247 = scalar_select %p246, %s26, 0
        %s248 = scalar_lea.vmem %s2, %s247
        %p249 = pneg %p106
        %p250 = pneg %p103
        %p251 = scmp.lt.s32.totalorder %s25, 1
        %s252 = scalar_select %p251, %s25, 1
        %s253 = smul.addr %s252, 8
        %s254 = scalar_lea.vmem %s3, %s253
        %p255 = pneg %p132
        %p256 = pneg %p129
        %p257 = pneg %p160
        %p258 = pneg %p157
        %s259 = sand.u32 %s147, 1
        %s260 = scalar_lea.sflag [#allocation4], %s259
        %s261 = sand.u32 %s147, 1
        %s262 = smul.addr %s261, 8
        %s263 = scalar_lea.vmem [#allocation5], %s262
        %p264 = scmp.lt.s32.totalorder %s26, 0
        %s265 = scalar_select %p264, %s26, 0
        %s266 = smul.addr %s265, 4
        %s267 = scalar_lea.vmem %s1, %s266
        %p268 = scmp.lt.s32.totalorder %s26, 0
        %s269 = scalar_select %p268, %s26, 0
        %s270 = scalar_lea.vmem %s2, %s269
        %p271 = scmp.lt.s32.totalorder %s25, 1
        %s272 = scalar_select %p271, %s25, 1
        %s273 = smul.addr %s272, 8
        %s274 = scalar_lea.vmem %s3, %s273
        %v276 = vld [vmem:[%s228] sm:$0xf]
        %v277 = vld [vmem:[%s267] sm:$0xf]
        %v278 = vld [vmem:[%s267 + $0x4] sm:$0xf]
        %v279 = vld [vmem:[%s267 + $0x8] sm:$0xf]
        %v280 = vld [vmem:[%s267 + $0xc] sm:$0xf]
        %v281 = vld [vmem:[%s270] sm:$0x1]
        %v283 = vlaneseq
        %v284 = vshrl.u32 %v283, 7
        %v285 = vsub.s32 0, %v284
        %v286 = vrot.slane %v281, %v285
        %v292 = vunpack.c.l.b16 %v277
        %v293 = vunpack.c.l.b16 %v278
        %v294 = vunpack.c.l.b16 %v279
        %v295 = vunpack.c.l.b16 %v280
        %v296 = vpack.c.b16 %v293, %v292
        %v297 = vpack.c.b16 %v295, %v294
        %vm300 = vcmask 261120
        %v302 = vsel %vm300, %v276, 0
        %304 = vmatprep.subr.bf16.mxu0 0
        %305 = vmatpush1.bf16.msra.mxu0 %v296
        %306 = vmatprep.subr.bf16.mxu0 0
        %307 = vmatpush1.bf16.msra.mxu0 %v297
        %308 = vmatprep.subr.bf16.mxu0 0
        %309 = vmatpush1.bf16.msra.mxu0 0
        %310 = vmatprep.subr.bf16.mxu0 0
        %311 = vmatpush1.bf16.msra.mxu0 0
        %312 = vmatprep.subr.bf16.mxu0 0
        %313 = vmatpush1.bf16.msra.mxu0 0
        %314 = vmatprep.subr.bf16.mxu0 0
        %315 = vmatpush1.bf16.msra.mxu0 0
        %316 = vmatprep.subr.bf16.mxu0 0
        %317 = vmatpush1.bf16.msra.mxu0 0
        %318 = vmatprep.subr.bf16.mxu0 0
        %319 = vmatpush1.bf16.msra.mxu0 0
        %320 = vmatprep.subr.bf16.mxu0 0
        %321 = vmatpush1.bf16.msra.mxu0 0
        %322 = vmatprep.subr.bf16.mxu0 0
        %323 = vmatpush1.bf16.msra.mxu0 0
        %324 = vmatprep.subr.bf16.mxu0 0
        %325 = vmatpush1.bf16.msra.mxu0 0
        %326 = vmatprep.subr.bf16.mxu0 0
        %327 = vmatpush1.bf16.msra.mxu0 0
        %328 = vmatprep.subr.bf16.mxu0 0
        %329 = vmatpush1.bf16.msra.mxu0 0
        %330 = vmatprep.subr.bf16.mxu0 0
        %331 = vmatpush1.bf16.msra.mxu0 0
        %332 = vmatprep.subr.bf16.mxu0 0
        %333 = vmatpush1.bf16.msra.mxu0 0
        %334 = vmatprep.subr.bf16.mxu0 0
        %335 = vmatpush1.bf16.msra.mxu0 0
        %336 = vmatprep.mubr.bf16.mxu0 0
        %337 = vmatmul.mubr.bf16.gmra.mrb[0].mxu0 %v302
        %v338 = vpop.f32.mrb[0].mxu0
        %v339 = vadd.f32 %v286, %v338
        %v340 = vpop.f32.mrb[0].mxu0
        %v341 = vpop.f32.mrb[0].mxu0
        %v342 = vpop.f32.mrb[0].mxu0
        %343 = vdwg.mxu0
        %v344 = vld [vmem:[%s274] sm:$0xff]
        %346 = vset.pattern.permute.xlu0 0
        %347 = vperm.xlu0 %346, %v344
        %v348 = vpop.permute.xlu0 %347
        %v350 = vmul.f32 %v339, %v348
        %vm351 = vcmask 203776
        %352 = vst.msk [vmem:[%s263] sm:$0xff] %vm351, %v350
        %s353 = sand.u32 %s147, 1
        %s354 = scalar_lea.sflag [#allocation4], %s353
        %s355 = sand.u32 %s147, 1
        %s356 = smul.addr %s355, 8
        %s357 = scalar_lea.vmem [#allocation5], %s356
        // Predicated region
        $region41: #{tpu_custom_call.1} parent=35 // pred_check
          %p358 = pneg %p157
        $region42: #{tpu_custom_call.1} parent=35 // pred_check_branch
          %360 = sbr.rel (%p358) target = $region44
        $region43: #{tpu_custom_call.1} parent=35 // pred_region
          %s362 = ssub.s32 128, 128
          %363 = vsyncadd %s354, %s362
          %s364 = sadd.s32 %s26, %s25
          %s365 = smul.addr %s364, 128
          %s366 = scalar_lea.hbm %s4, %s365
          %s368 = sshll.u32 %s357, 4
          %s369 = int_to_ptr.vmem [resolvable:$true] %s368
          %371 = dma.vmem_to_hbm [thread:$0]  %s369, 128, %s366, %s354
        $region44: #{tpu_custom_call.1} parent=35 // pred_fallthru
          _
      $region36: #{tpu_custom_call.1} parent=5 // pred_fallthru
        _
      %p372 = scmp.le.s32.totalorder 2, %s16
      // Predicated region
      $region45: #{tpu_custom_call.1} parent=5 // pred_check
        %p373 = pneg %p372
      $region46: #{tpu_custom_call.1} parent=5 // pred_check_branch
        %375 = sbr.rel (%p373) target = $region48
      $region47: #{tpu_custom_call.1} parent=5 // pred_region
        %s376 = ssub.s32 %s16, 2
        // Predicated region
        $region49: #{tpu_custom_call.1} parent=47 // pred_check
          %p377 = pneg %p163
        $region50: #{tpu_custom_call.1} parent=47 // pred_check_branch
          %379 = sbr.rel (%p377) target = $region52
        $region51: #{tpu_custom_call.1} parent=47 // pred_region
          %s380 = sand.u32 %s148, 1
          %s381 = scalar_lea.sflag [#allocation4], %s380
          %s382 = sand.u32 %s148, 1
          %s383 = smul.addr %s382, 8
          %s384 = scalar_lea.vmem [#allocation5], %s383
          %385 = dma.done %s381, 128
        $region52: #{tpu_custom_call.1} parent=47 // pred_fallthru
          _
      $region48: #{tpu_custom_call.1} parent=5 // pred_fallthru
        _
    $region6: #{tpu_custom_call.1} parent=1 // loop_footer
      %s20 = sadd.s32 1, %s16
    $region7: #{tpu_custom_call.1} parent=1 // loop_footer_branch
      %15 = sbr.rel target = $region3
    $region8: #{tpu_custom_call.1} parent=1 // loop_exit
      _
    %386 = vsyncpa [#allocation3], 1
    %s387 = scalar_lea.sflag [#allocation3], 1
    %388 = vsyncpa %s387, 1
    %389 = vsyncpa [#allocation4], 1
    %s390 = scalar_lea.sflag [#allocation4], 1
    %391 = vsyncpa %s390, 1

</llo_original>
